<compile_context>
chip_gen: v7x
topology: tpu7x:2x2x1
jax: 0.10.0
libtpu: 0.0.40
codegen_flags: <defaults>
</compile_context>

<pallas_src>
import jax
import jax.numpy as jnp
from jax.experimental import pallas as pl
from jax.experimental.pallas import tpu as pltpu


_LANE = 128       # f32 lane tile
_SUBLANE = 8      # f32 sublane tile
_BLOCK_T = 1024   # lane-axis tile (multiple of 128)
_BLOCK_R = 256    # row-axis tile (multiple of 8 and 16)


def _snake_kernel(x_ref, two_a_ref, half_inv_ref, o_ref):
    # y = x + (alpha+eps)^-1 * sin(alpha*x)^2
    #   = x + half_inv * (1 - cos(2*alpha*x)),   half_inv = 0.5/(alpha+eps)
    x = x_ref[...]                 # (br, bt)
    two_a = two_a_ref[...]         # (br, 1) -> broadcasts over lanes
    half_inv = half_inv_ref[...]   # (br, 1)
    c = jnp.cos(two_a * x)
    o_ref[...] = (x + half_inv) - half_inv * c


def _round_up(n, m):
    return ((n + m - 1) // m) * m


def snake1d(x: jax.Array, alpha: jax.Array) -> jax.Array:
    """Snake activation.  x: (B, C, T); alpha: (1, C, 1)."""
    eps = 1e-9
    B, C, T = x.shape
    dtype = x.dtype

    # ---- fold (B, C) -> rows; precompute tiny per-row params in the wrapper.
    R = B * C
    alpha_c = alpha.reshape(1, C).astype(jnp.float32)
    two_a = jnp.broadcast_to(2.0 * alpha_c, (B, C)).reshape(R, 1).astype(dtype)
    half_inv = (
        jnp.broadcast_to(0.5 / (alpha_c + eps), (B, C)).reshape(R, 1).astype(dtype)
    )

    x2 = x.reshape(R, T)

    # ---- pad to lane/sublane-dense tiles so every block is full.
    Tp = _round_up(T, _LANE)
    bt = Tp if Tp <= _BLOCK_T else _BLOCK_T
    Tp = _round_up(Tp, bt)

    Rp = _round_up(R, _SUBLANE)
    br = Rp if Rp <= _BLOCK_R else _BLOCK_R
    Rp = _round_up(Rp, br)

    if (Rp, Tp) != (R, T):
        x2 = jnp.pad(x2, ((0, Rp - R), (0, Tp - T)))
    if Rp != R:
        two_a = jnp.pad(two_a, ((0, Rp - R), (0, 0)))
        half_inv = jnp.pad(half_inv, ((0, Rp - R), (0, 0)))

    grid = (Rp // br, Tp // bt)

    out = pl.pallas_call(
        _snake_kernel,
        out_shape=jax.ShapeDtypeStruct((Rp, Tp), dtype),
        grid=grid,
        in_specs=[
            pl.BlockSpec((br, bt), lambda r, t: (r, t)),
            # per-row params: block index only changes with the row tile, so
            # they are not re-DMA'd as we sweep the T axis.
            pl.BlockSpec((br, 1), lambda r, t: (r, 0)),
            pl.BlockSpec((br, 1), lambda r, t: (r, 0)),
        ],
        out_specs=pl.BlockSpec((br, bt), lambda r, t: (r, t)),
        compiler_params=pltpu.CompilerParams(
            dimension_semantics=("parallel", "parallel"),
            vmem_limit_bytes=32 * 1024 * 1024,
        ),
    )(x2, two_a, half_inv)

    return out[:R, :T].reshape(B, C, T)


def snake1d_ref(x, alpha):
    eps = 1e-9
    return x + (1.0 / (alpha + eps)) * jnp.sin(alpha * x) ** 2


if __name__ == "__main__":
    key = jax.random.PRNGKey(0)

    # --- small shape matching the PyTorch module layout (B, C, T) ---
    B, C, T = 2, 4, 16
    kx, ka, kx2, ka2 = jax.random.split(key, 4)
    x = jax.random.normal(kx, (B, C, T), dtype=jnp.float32)
    # nn.Parameter(torch.ones(1, C, 1)) perturbed slightly so broadcasting
    # over batch/time is actually exercised.
    alpha = jnp.ones((1, C, 1), dtype=jnp.float32) + 0.1 * jax.random.normal(
        ka, (1, C, 1), dtype=jnp.float32
    )

    out = jax.block_until_ready(snake1d(x, alpha))
    ref = snake1d_ref(x, alpha)
    assert out.shape == (B, C, T)
    assert jnp.allclose(out, ref, atol=1e-5, rtol=1e-5)

    # --- second check: ragged shape to exercise padding + multi-tile grid ---
    B2, C2, T2 = 2, 10, 1300
    x2 = jax.random.normal(kx2, (B2, C2, T2), dtype=jnp.float32)
    alpha2 = jnp.ones((1, C2, 1), dtype=jnp.float32) + 0.1 * jax.random.normal(
        ka2, (1, C2, 1), dtype=jnp.float32
    )
    out2 = jax.block_until_ready(snake1d(x2, alpha2))
    ref2 = snake1d_ref(x2, alpha2)
    assert out2.shape == (B2, C2, T2)
    assert jnp.allclose(out2, ref2, atol=1e-5, rtol=1e-5)

    print("KERNEL_OK")
</pallas_src>

<mosaic_0001>
module attributes {stable_mosaic.version = 11 : i64} {
  func.func @_snake_kernel(%arg0: i32, %arg1: i32, %arg2: memref<8x128xf32, #tpu.memory_space<vmem>>, %arg3: memref<8x1xf32, #tpu.memory_space<vmem>>, %arg4: memref<8x1xf32, #tpu.memory_space<vmem>>, %arg5: memref<8x128xf32, #tpu.memory_space<vmem>>) attributes {dimension_semantics = [#tpu.dimension_semantics<parallel>, #tpu.dimension_semantics<parallel>], iteration_bounds = array<i64: 1, 1>, scalar_prefetch = 0 : i64, scratch_operands = 0 : i64, tpu.core_type = #tpu.core_type<tc>, window_params = [{transform_indices = @transform_0, window_bounds = array<i64: 8, 128>}, {transform_indices = @transform_1, window_bounds = array<i64: 8, 1>}, {transform_indices = @transform_2, window_bounds = array<i64: 8, 1>}, {transform_indices = @transform_3, window_bounds = array<i64: 8, 128>}]} {
    %c0 = arith.constant 0 : index
    %c0_0 = arith.constant 0 : index
    %0 = vector.load %arg2[%c0, %c0_0] : memref<8x128xf32, #tpu.memory_space<vmem>>, vector<8x128xf32>
    %c0_1 = arith.constant 0 : index
    %c0_2 = arith.constant 0 : index
    %1 = vector.load %arg3[%c0_1, %c0_2] : memref<8x1xf32, #tpu.memory_space<vmem>>, vector<8x1xf32>
    %c0_3 = arith.constant 0 : index
    %c0_4 = arith.constant 0 : index
    %2 = vector.load %arg4[%c0_3, %c0_4] : memref<8x1xf32, #tpu.memory_space<vmem>>, vector<8x1xf32>
    %3 = vector.broadcast %1 : vector<8x1xf32> to vector<8x128xf32>
    %4 = arith.mulf %3, %0 : vector<8x128xf32>
    %5 = math.cos %4 : vector<8x128xf32>
    %6 = vector.broadcast %2 : vector<8x1xf32> to vector<8x128xf32>
    %7 = arith.addf %0, %6 : vector<8x128xf32>
    %8 = vector.broadcast %2 : vector<8x1xf32> to vector<8x128xf32>
    %9 = arith.mulf %8, %5 : vector<8x128xf32>
    %10 = arith.subf %7, %9 : vector<8x128xf32>
    %c0_5 = arith.constant 0 : index
    %c0_6 = arith.constant 0 : index
    %11 = vector.load %arg5[%c0_5, %c0_6] : memref<8x128xf32, #tpu.memory_space<vmem>>, vector<8x128xf32>
    tpu.vector_store %arg5[%c0_5, %c0_6], %10 {strides = array<i32>} : memref<8x128xf32, #tpu.memory_space<vmem>>, vector<8x128xf32>,
    return
  }
  func.func @transform_0(%arg0: i32, %arg1: i32) -> (i32, i32) {
    %c0_i32 = arith.constant 0 : i32
    return %arg0, %arg1 : i32, i32
  }
  func.func @transform_1(%arg0: i32, %arg1: i32) -> (i32, i32) {
    %c0_i32 = arith.constant 0 : i32
    %c0_i32_0 = arith.constant 0 : i32
    return %arg0, %c0_i32 : i32, i32
  }
  func.func @transform_2(%arg0: i32, %arg1: i32) -> (i32, i32) {
    %c0_i32 = arith.constant 0 : i32
    %c0_i32_0 = arith.constant 0 : i32
    return %arg0, %c0_i32 : i32, i32
  }
  func.func @transform_3(%arg0: i32, %arg1: i32) -> (i32, i32) {
    %c0_i32 = arith.constant 0 : i32
    return %arg0, %arg1 : i32, i32
  }
}

</mosaic_0001>

<llo_original>
// kernel: tpu_custom_call.1
$region0: #{tpu_custom_call.1}
  #allocation0 [shape = 'u32[]', space=smem, size = 0x4, offset = 0x4, fixed_abs, tag = 'smem constant byte address 0x4 - core index']
  #allocation1 [shape = 'u32[144,128]{1,0:T(1,128)}', space=vmem, size = 0x12000, scoped, tag = 'internal scratch']
  %s0 = inlined_call_operand.vmem [shape: f32[8,128], index: 0, kind: input, shape index: {}]
  %s1 = inlined_call_operand.vmem [shape: f32[8,1], index: 1, kind: input, shape index: {}]
  %s2 = inlined_call_operand.vmem [shape: f32[8,1], index: 2, kind: input, shape index: {}]
  %s3 = inlined_call_operand.hbm [shape: f32[8,128], index: 3, kind: output, shape index: {}]
  %s4 = sld [smem:[#allocation0]]
  $region22: #{tpu_custom_call.1} parent=0
    _
  %s6 = ssub.s32 1, %s4
  %s7 = scalar_select 0, %s6, %s4
  $region1: #{tpu_custom_call.1} parent=0
    #allocation2 [shape = 'u8[4096]{0}', space=vmem, size = 0x1000, scoped, tag = 'output window, operand 0, single buffered']
    #allocation3 [shape = 's32[1]{0}', space=sflag, size = 0x4, scoped, tag = 'scoped memory for tpu_custom_call.1']
    %8 = vsyncpa [#allocation3], 0
    // Predicated region
    $region2: #{tpu_custom_call.1} parent=1 // pred_check
      _
    $region3: #{tpu_custom_call.1} parent=1 // pred_check_branch
      %10 = sbr.rel (0) target = $region5
    $region4: #{tpu_custom_call.1} parent=1 // pred_region
      _
    $region5: #{tpu_custom_call.1} parent=1 // pred_fallthru
      _
    // Predicated region
    $region6: #{tpu_custom_call.1} parent=1 // pred_check
      _
    $region7: #{tpu_custom_call.1} parent=1 // pred_check_branch
      %12 = sbr.rel (0) target = $region9
    $region8: #{tpu_custom_call.1} parent=1 // pred_region
      _
    $region9: #{tpu_custom_call.1} parent=1 // pred_fallthru
      _
    // Predicated region
    $region10: #{tpu_custom_call.1} parent=1 // pred_check
      _
    $region11: #{tpu_custom_call.1} parent=1 // pred_check_branch
      %14 = sbr.rel (0) target = $region13
    $region12: #{tpu_custom_call.1} parent=1 // pred_region
      _
    $region13: #{tpu_custom_call.1} parent=1 // pred_fallthru
      _
    %v15 = vld [vmem:[%s0] sm:$0xff]
    %v16 = vld [vmem:[%s1] sm:$0xff]
    %v17 = vld [vmem:[%s2] sm:$0xff]
    %19 = vset.pattern.permute.xlu0 0
    %20 = vperm.xlu0 %19, %v16
    %v21 = vpop.permute.xlu0 %20
    %v23 = vmul.f32 %v21, %v15
    %v24 = vand.u32 2147483647, %v23
    %vm25 = vcmp.le.f32.partialorder %v24, 0.7853982
    %vm26 = vcmp.lt.s32.totalorder %v23, 0
    %v27 = vand.u32 %v23, 2139095040
    %v28 = vshrl.u32 %v27, 23
    %v29 = vsub.s32 %v28, 127
    %v30 = vand.u32 2147483647, %v23
    %v31 = vand.u32 %v30, 8388607
    %v32 = vor.u32 %v31, 8388608
    %v33 = vsub.s32 0, %v32
    %v34 = vadd.s32 %v29, 1
    %vm35 = vcmp.gt.s32.totalorder %v34, 0
    %v36 = vsel %vm35, %v34, 0
    %v37 = vshrl.u32 %v36, 5
    %v38 = vand.u32 %v36, 31
    %v39 = vsub.s32 32, %v38
    %v40 = vshrl.u32 683565275, %v39
    %v41 = vshll.u32 683565275, %v38
    %v42 = vshrl.u32 2475754826, %v39
    %v43 = vor.u32 %v41, %v42
    %v44 = vshll.u32 2475754826, %v38
    %v45 = vshrl.u32 2131351028, %v39
    %v46 = vor.u32 %v44, %v45
    %v47 = vshll.u32 2131351028, %v38
    %v48 = vshrl.u32 2102212464, %v39
    %v49 = vor.u32 %v47, %v48
    %v50 = vshll.u32 2102212464, %v38
    %v51 = vshrl.u32 920167782, %v39
    %v52 = vor.u32 %v50, %v51
    %v53 = vshll.u32 920167782, %v38
    %v54 = vshrl.u32 1326507024, %v39
    %v55 = vor.u32 %v53, %v54
    %vm56 = vcmp.lt.s32.totalorder %v37, 1
    %vm57 = vcmp.lt.s32.totalorder %v37, 2
    %vm58 = vcmp.lt.s32.totalorder %v37, 3
    %vm59 = vcmp.lt.s32.totalorder %v37, 4
    %v60 = vsel %vm56, %v40, %v43
    %v61 = vsel %vm59, %v49, 2102212464
    %v62 = vsel %vm58, %v46, %v61
    %v63 = vsel %vm57, %v60, %v62
    %v64 = vsel %vm56, %v43, %v46
    %v65 = vsel %vm59, %v52, 920167782
    %v66 = vsel %vm58, %v49, %v65
    %v67 = vsel %vm57, %v64, %v66
    %v68 = vsel %vm56, %v46, %v49
    %v69 = vsel %vm59, %v55, 1326507024
    %v70 = vsel %vm58, %v52, %v69
    %v71 = vsel %vm57, %v68, %v70
    %v72 = vshll.u32 %v32, 8
    %v73 = vmul.u32.u64.compose %v72, %v71
    %v74 = vextract.low.u32 %v73
    %v75 = vextract.high.u32 %v73
    %v76 = vmul.u32.u64.compose %v72, %v67
    %v77 = vextract.low.u32 %v76
    %v78 = vextract.high.u32 %v76
    %v79 = vmul.u32 %v72, %v63
    %v80 = vadd.s32 %v75, %v77
    %vm81 = vc.u32 %v75, %v77
    %v82 = vadd.s32 %v78, 1
    %v83 = vsel %vm81, %v82, %v78
    %v84 = vadd.s32 %v79, %v83
    %v85 = vadd.s32 %v84, 536870912
    %v86 = vshrl.u32 %v85, 30
    %v87 = vshll.u32 %v86, 30
    %v88 = vsub.s32 %v84, %v87
    %vm89 = vcmp.lt.s32.totalorder %v88, 0
    %v90 = vsub.s32 0, %v88
    %v91 = vsel %vm89, %v90, %v88
    %v92 = vclz %v91
    %v93 = vsub.s32 %v92, 2
    %vm94 = vcmp.gt.s32.totalorder 0, %v93
    %v95 = vsel %vm94, 0, %v93
    %v96 = vsub.s32 32, %v95
    %v97 = vshll.u32 %v88, %v95
    %v98 = vshrl.u32 %v80, %v96
    %v99 = vor.u32 %v97, %v98
    %v100 = vsub.s32 4294967266, %v95
    %v101 = vadd.s32 %v100, 127
    %v102 = vshll.u32 %v101, 23
    %v103 = vor.u32 4788187, %v102
    %v104 = vand.u32 2147483647, %v103
    %v106 = vcvt.s32.f32 %v99
    %v107 = vmul.f32 %v106, %v104
    %v108 = vxor.u32 %v107, 2147483648
    %v109 = vsel %vm26, %v108, %v107
    %v110 = vsub.s32 4, %v86
    %v111 = vsel %vm26, %v110, %v86
    %v112 = vsel %vm25, %v23, %v109
    %v113 = vsel %vm25, 0, %v111
    %v114 = vcosq.f32.pop %v112
    %v115 = vsinq.f32.pop %v112
    %vm116 = vweird.f32 %v23
    %v117 = vand.u32 %v113, 3
    %vm118 = vcmp.lt.s32.totalorder %v117, 2
    %vm119 = vcmp.eq.s32.totalorder %v117, 0
    %v120 = vxor.u32 %v115, 2147483648
    %v121 = vsel %vm119, %v114, %v120
    %vm122 = vcmp.eq.s32.totalorder %v117, 2
    %v123 = vxor.u32 %v114, 2147483648
    %v124 = vsel %vm122, %v123, %v115
    %v125 = vsel %vm118, %v121, %v124
    %v126 = vsel %vm116, nan, %v125
    %128 = vset.pattern.permute.xlu0 0
    %129 = vperm.xlu0 %128, %v17
    %v130 = vpop.permute.xlu0 %129
    %v132 = vadd.f32 %v15, %v130
    %v133 = vmul.f32 %v130, %v126
    %v134 = vsub.f32 %v132, %v133
    %135 = vst [vmem:[#allocation2] sm:$0xff] %v134
    // Predicated region
    $region14: #{tpu_custom_call.1} parent=1 // pred_check
      _
    $region15: #{tpu_custom_call.1} parent=1 // pred_check_branch
      %137 = sbr.rel (0) target = $region17
    $region16: #{tpu_custom_call.1} parent=1 // pred_region
      %s139 = ssub.s32 128, 128
      %140 = vsyncadd [#allocation3], %s139
      %s142 = sshll.u32 [#allocation2], 4
      %s143 = int_to_ptr.vmem [resolvable:$true] %s142
      %145 = dma.vmem_to_hbm [thread:$0]  %s143, 128, %s3, [#allocation3]
    $region17: #{tpu_custom_call.1} parent=1 // pred_fallthru
      _
    // Predicated region
    $region18: #{tpu_custom_call.1} parent=1 // pred_check
      _
    $region19: #{tpu_custom_call.1} parent=1 // pred_check_branch
      %147 = sbr.rel (0) target = $region21
    $region20: #{tpu_custom_call.1} parent=1 // pred_region
      %148 = dma.done [#allocation3], 128
    $region21: #{tpu_custom_call.1} parent=1 // pred_fallthru
      _
    %149 = vsyncpa [#allocation3], 1

</llo_original>
